<compile_context>
chip_gen: v7x
topology: tpu7x:2x2x1
jax: 0.10.0
libtpu: 0.0.40
codegen_flags: <defaults>
</compile_context>

<pallas_src>
import jax
import jax.numpy as jnp
from jax.experimental import pallas as pl
from jax.experimental.pallas import tpu as pltpu


def _round_up(n, m):
    return ((n + m - 1) // m) * m


def base_method_kernel(x_ref, wct_ref, bct_ref, w1_ref, b1_ref, w2_ref, b2_ref,
                       o_ref):
    """One batch tile (TB elements) per grid step.

    x_ref:   (TB, C, HW)  NCHW pixels, HW lane-dense
    wct_ref: (C, F, 1)    encoder 1x1-conv weight, one (F, 1) column per channel
    bct_ref: (F, 1)       encoder bias
    w1_ref:  (F, Hh)      head layer-1 weight
    b1_ref:  (1, Hh)      head layer-1 bias
    w2_ref:  (Hh, Ep)     head layer-2 weight (lane-padded to Ep, mult. of 128)
    b2_ref:  (1, Ep)      head layer-2 bias (lane-padded)
    o_ref:   (TB, Ep)     lane-dense output block
    """
    TB, C, HW = x_ref.shape

    x = x_ref[...]        # (TB, C, HW)
    w = wct_ref[...]      # (C, F, 1)

    # --- encoder: 1x1 conv (channel mix) as an unrolled C-term VPU FMA chain.
    # K = C is tiny, so an MXU contraction would be ~3% utilized; the VPU does
    # the same element-op count without an MXU pass.  h layout: (TB, F, HW),
    # HW stays on lanes.
    acc = x[:, 0:1, :] * w[0]                       # (TB,1,HW)*(F,1) -> (TB,F,HW)
    for c in range(1, C):                           # static unroll, C is small
        acc = acc + x[:, c:c + 1, :] * w[c]
    h = jnp.maximum(acc + bct_ref[...], 0.0)        # (TB, F, HW)

    # --- global average pool: reduction over the HW (lane) axis.  No pooling
    # matrix, no wasted MXU FLOPs.
    feats = jnp.sum(h, axis=-1) * jnp.float32(1.0 / HW)   # (TB, F)

    # --- head: Linear -> ReLU -> Linear on the MXU, M = TB per step,
    # weights resident (constant index_map).
    z = jnp.dot(feats, w1_ref[...], preferred_element_type=jnp.float32) + b1_ref[...]
    z = jnp.maximum(z, 0.0)
    out = jnp.dot(z, w2_ref[...], preferred_element_type=jnp.float32) + b2_ref[...]

    o_ref[...] = out.astype(o_ref.dtype)


def prepare_params(params, lane=128):
    """One-time layout/padding of the parameters (not per forward call)."""
    wc, bc, w1, b1, w2, b2 = params
    C, F = wc.shape
    Hh, E = w2.shape
    Ep = _round_up(E, lane)
    return dict(
        wct=wc.reshape(C, F, 1),                     # per-channel (F, 1) columns
        bct=bc.reshape(F, 1),
        w1=w1,
        b1=b1,
        w2p=jnp.pad(w2, ((0, 0), (0, Ep - E))),      # lane-dense output store
        b2p=jnp.pad(b2, ((0, 0), (0, Ep - E))),
        emb=E,
    )


def base_method_forward(x_nchw, prep):
    """x_nchw: [B, C, H, W] float32. Returns [B, emb] float32."""
    B, C, H, W = x_nchw.shape
    HW = H * W
    wct, bct = prep["wct"], prep["bct"]
    w1, b1 = prep["w1"], prep["b1"]
    w2p, b2p = prep["w2p"], prep["b2p"]
    E = prep["emb"]
    F, Hh = w1.shape
    Ep = w2p.shape[1]

    # Batch tiling: tiny batches run as one full-batch tile (block == full dim,
    # so no (8,128) issue); larger batches split into >= 2 multiple-of-8 tiles
    # so both v7x TensorCores get work, capped at 64 for VMEM headroom.
    if B <= 8:
        TB = B
    else:
        TB = min(_round_up(pl.cdiv(B, 2), 8), 64)
    num_tiles = pl.cdiv(B, TB)
    B_pad = num_tiles * TB

    # NCHW -> (B, C, HW) is a pure reshape (HW already contiguous): no wrapper
    # transpose, no extra HBM pass; HW is the lane axis inside the kernel.
    x = x_nchw.reshape(B, C, HW)
    if B_pad != B:
        x = jnp.pad(x, ((0, B_pad - B), (0, 0), (0, 0)))

    flops = (2 * B_pad * HW * C * F        # encoder channel mix
             + 2 * B_pad * HW * F          # bias + relu
             + B_pad * HW * F              # pooling reduction
             + 2 * B_pad * F * Hh          # head layer 1
             + 2 * B_pad * Hh * Ep)        # head layer 2
    bytes_accessed = 4 * (B_pad * C * HW + C * F + F + F * Hh + Hh
                          + Hh * Ep + Ep + B_pad * Ep)

    out_pad = pl.pallas_call(
        base_method_kernel,
        out_shape=jax.ShapeDtypeStruct((B_pad, Ep), jnp.float32),
        grid_spec=pltpu.PrefetchScalarGridSpec(
            num_scalar_prefetch=0,
            grid=(num_tiles,),
            in_specs=[
                pl.BlockSpec((TB, C, HW), lambda t: (t, 0, 0)),   # x tile
                pl.BlockSpec((C, F, 1), lambda t: (0, 0, 0)),     # encoder W
                pl.BlockSpec((F, 1), lambda t: (0, 0)),           # encoder b
                pl.BlockSpec((F, Hh), lambda t: (0, 0)),          # head W1
                pl.BlockSpec((1, Hh), lambda t: (0, 0)),          # head b1
                pl.BlockSpec((Hh, Ep), lambda t: (0, 0)),         # head W2 (padded)
                pl.BlockSpec((1, Ep), lambda t: (0, 0)),          # head b2 (padded)
            ],
            out_specs=pl.BlockSpec((TB, Ep), lambda t: (t, 0)),
        ),
        compiler_params=pltpu.CompilerParams(
            dimension_semantics=("parallel",),
        ),
        cost_estimate=pl.CostEstimate(
            flops=flops, transcendentals=0, bytes_accessed=bytes_accessed),
    )(x, wct, bct, w1, b1, w2p, b2p)

    return out_pad[:B, :E]


def init_params(key, C, out_size, head_hidden, emb):
    ks = jax.random.split(key, 6)
    scale = 0.02
    wc = scale * jax.random.normal(ks[0], (C, out_size), jnp.float32)
    bc = scale * jax.random.normal(ks[1], (1, out_size), jnp.float32)
    w1 = scale * jax.random.normal(ks[2], (out_size, head_hidden), jnp.float32)
    b1 = scale * jax.random.normal(ks[3], (1, head_hidden), jnp.float32)
    w2 = scale * jax.random.normal(ks[4], (head_hidden, emb), jnp.float32)
    b2 = scale * jax.random.normal(ks[5], (1, emb), jnp.float32)
    return (wc, bc, w1, b1, w2, b2)


def reference_forward(x_nchw, params):
    """Pure-JAX reference for correctness check."""
    wc, bc, w1, b1, w2, b2 = params
    B, C, H, W = x_nchw.shape
    x = jnp.transpose(x_nchw, (0, 2, 3, 1)).reshape(B, H * W, C)
    h = jnp.maximum(jnp.einsum("bpc,cf->bpf", x, wc) + bc, 0.0)
    feats = jnp.mean(h, axis=1)
    z = jnp.maximum(feats @ w1 + b1, 0.0)
    return z @ w2 + b2


if __name__ == "__main__":
    # Small shapes consistent with an image-SSL setup: batch=2, channels=4, 16x16.
    B, C, H, W = 2, 4, 16, 16
    out_size, head_hidden, emb = 32, 64, 32

    key = jax.random.PRNGKey(0)
    kx, kp = jax.random.split(key)
    x = jax.random.normal(kx, (B, C, H, W), jnp.float32)
    params = init_params(kp, C, out_size, head_hidden, emb)
    prep = prepare_params(params)   # one-time weight padding / layout

    # TODO(synk): BaseMethod.forward itself raises NotImplementedError in
    # PyTorch; the subclass-specific SSL loss over `num_pairs` views and the
    # kNN/linear evaluation loop are not translated here.
    out = base_method_forward(x, prep)
    out = jax.block_until_ready(out)

    ref = reference_forward(x, params)
    assert out.shape == (B, emb), out.shape
    assert jnp.allclose(out, ref, atol=1e-4, rtol=1e-4), "mismatch vs reference"

    print("KERNEL_OK")
</pallas_src>

<mosaic_0001>
module attributes {stable_mosaic.version = 11 : i64} {
  func.func @base_method_kernel(%arg0: i32, %arg1: memref<2x4x256xf32, #tpu.memory_space<vmem>>, %arg2: memref<4x32x1xf32, #tpu.memory_space<vmem>>, %arg3: memref<32x1xf32, #tpu.memory_space<vmem>>, %arg4: memref<32x64xf32, #tpu.memory_space<vmem>>, %arg5: memref<1x64xf32, #tpu.memory_space<vmem>>, %arg6: memref<64x128xf32, #tpu.memory_space<vmem>>, %arg7: memref<1x128xf32, #tpu.memory_space<vmem>>, %arg8: memref<2x128xf32, #tpu.memory_space<vmem>>) attributes {dimension_semantics = [#tpu.dimension_semantics<parallel>], iteration_bounds = array<i64: 1>, scalar_prefetch = 0 : i64, scratch_operands = 0 : i64, tpu.core_type = #tpu.core_type<tc>, window_params = [{transform_indices = @transform_0, window_bounds = array<i64: 2, 4, 256>}, {pipeline_mode = #tpu.pipeline_mode<synchronous>, transform_indices = @transform_1, window_bounds = array<i64: 4, 32, 1>}, {pipeline_mode = #tpu.pipeline_mode<synchronous>, transform_indices = @transform_2, window_bounds = array<i64: 32, 1>}, {pipeline_mode = #tpu.pipeline_mode<synchronous>, transform_indices = @transform_3, window_bounds = array<i64: 32, 64>}, {pipeline_mode = #tpu.pipeline_mode<synchronous>, transform_indices = @transform_4, window_bounds = array<i64: 1, 64>}, {pipeline_mode = #tpu.pipeline_mode<synchronous>, transform_indices = @transform_5, window_bounds = array<i64: 64, 128>}, {pipeline_mode = #tpu.pipeline_mode<synchronous>, transform_indices = @transform_6, window_bounds = array<i64: 1, 128>}, {transform_indices = @transform_7, window_bounds = array<i64: 2, 128>}]} {
    %c0 = arith.constant 0 : index
    %c0_0 = arith.constant 0 : index
    %c0_1 = arith.constant 0 : index
    %0 = vector.load %arg1[%c0, %c0_0, %c0_1] : memref<2x4x256xf32, #tpu.memory_space<vmem>>, vector<2x4x256xf32>
    %c0_2 = arith.constant 0 : index
    %c0_3 = arith.constant 0 : index
    %c0_4 = arith.constant 0 : index
    %1 = vector.load %arg2[%c0_2, %c0_3, %c0_4] : memref<4x32x1xf32, #tpu.memory_space<vmem>>, vector<4x32x1xf32>
    %2 = vector.extract_strided_slice %0 {offsets = [0, 0, 0], sizes = [2, 1, 256], strides = [1, 1, 1]} : vector<2x4x256xf32> to vector<2x1x256xf32>
    %3 = vector.extract_strided_slice %1 {offsets = [0, 0, 0], sizes = [1, 32, 1], strides = [1, 1, 1]} : vector<4x32x1xf32> to vector<1x32x1xf32>
    %4 = vector.shape_cast %3 : vector<1x32x1xf32> to vector<32x1xf32>
    %5 = vector.shape_cast %4 : vector<32x1xf32> to vector<1x32x1xf32>
    %6 = vector.broadcast %2 : vector<2x1x256xf32> to vector<2x32x256xf32>
    %7 = vector.broadcast %5 : vector<1x32x1xf32> to vector<2x32x256xf32>
    %8 = arith.mulf %6, %7 : vector<2x32x256xf32>
    %9 = vector.extract_strided_slice %0 {offsets = [0, 1, 0], sizes = [2, 1, 256], strides = [1, 1, 1]} : vector<2x4x256xf32> to vector<2x1x256xf32>
    %10 = vector.extract_strided_slice %1 {offsets = [1, 0, 0], sizes = [1, 32, 1], strides = [1, 1, 1]} : vector<4x32x1xf32> to vector<1x32x1xf32>
    %11 = vector.shape_cast %10 : vector<1x32x1xf32> to vector<32x1xf32>
    %12 = vector.shape_cast %11 : vector<32x1xf32> to vector<1x32x1xf32>
    %13 = vector.broadcast %9 : vector<2x1x256xf32> to vector<2x32x256xf32>
    %14 = vector.broadcast %12 : vector<1x32x1xf32> to vector<2x32x256xf32>
    %15 = arith.mulf %13, %14 : vector<2x32x256xf32>
    %16 = arith.addf %8, %15 : vector<2x32x256xf32>
    %17 = vector.extract_strided_slice %0 {offsets = [0, 2, 0], sizes = [2, 1, 256], strides = [1, 1, 1]} : vector<2x4x256xf32> to vector<2x1x256xf32>
    %18 = vector.extract_strided_slice %1 {offsets = [2, 0, 0], sizes = [1, 32, 1], strides = [1, 1, 1]} : vector<4x32x1xf32> to vector<1x32x1xf32>
    %19 = vector.shape_cast %18 : vector<1x32x1xf32> to vector<32x1xf32>
    %20 = vector.shape_cast %19 : vector<32x1xf32> to vector<1x32x1xf32>
    %21 = vector.broadcast %17 : vector<2x1x256xf32> to vector<2x32x256xf32>
    %22 = vector.broadcast %20 : vector<1x32x1xf32> to vector<2x32x256xf32>
    %23 = arith.mulf %21, %22 : vector<2x32x256xf32>
    %24 = arith.addf %16, %23 : vector<2x32x256xf32>
    %25 = vector.extract_strided_slice %0 {offsets = [0, 3, 0], sizes = [2, 1, 256], strides = [1, 1, 1]} : vector<2x4x256xf32> to vector<2x1x256xf32>
    %26 = vector.extract_strided_slice %1 {offsets = [3, 0, 0], sizes = [1, 32, 1], strides = [1, 1, 1]} : vector<4x32x1xf32> to vector<1x32x1xf32>
    %27 = vector.shape_cast %26 : vector<1x32x1xf32> to vector<32x1xf32>
    %28 = vector.shape_cast %27 : vector<32x1xf32> to vector<1x32x1xf32>
    %29 = vector.broadcast %25 : vector<2x1x256xf32> to vector<2x32x256xf32>
    %30 = vector.broadcast %28 : vector<1x32x1xf32> to vector<2x32x256xf32>
    %31 = arith.mulf %29, %30 : vector<2x32x256xf32>
    %32 = arith.addf %24, %31 : vector<2x32x256xf32>
    %c0_5 = arith.constant 0 : index
    %c0_6 = arith.constant 0 : index
    %33 = vector.load %arg3[%c0_5, %c0_6] : memref<32x1xf32, #tpu.memory_space<vmem>>, vector<32x1xf32>
    %34 = vector.shape_cast %33 : vector<32x1xf32> to vector<1x32x1xf32>
    %35 = vector.broadcast %34 : vector<1x32x1xf32> to vector<2x32x256xf32>
    %36 = arith.addf %32, %35 : vector<2x32x256xf32>
    %cst = arith.constant 0.000000e+00 : f32
    %37 = vector.broadcast %cst : f32 to vector<2x32x256xf32>
    %38 = arith.maximumf %36, %37 : vector<2x32x256xf32>
    %cst_7 = arith.constant dense<0.000000e+00> : vector<2x32xf32>
    %39 = vector.multi_reduction <add>, %38, %cst_7 [2] : vector<2x32x256xf32> to vector<2x32xf32>
    %cst_8 = arith.constant 3.906250e-03 : f32
    %40 = vector.broadcast %cst_8 : f32 to vector<2x32xf32>
    %41 = arith.mulf %39, %40 : vector<2x32xf32>
    %c0_9 = arith.constant 0 : index
    %c0_10 = arith.constant 0 : index
    %42 = vector.load %arg4[%c0_9, %c0_10] : memref<32x64xf32, #tpu.memory_space<vmem>>, vector<32x64xf32>
    %cst_11 = arith.constant dense<0.000000e+00> : vector<2x64xf32>
    %43 = tpu.matmul %41, %42, %cst_11 {dimension_numbers = #tpu.dot_dimension_numbers<[1], [0], [0], [1], [0, 0, 1, 1], [], []>} : vector<2x32xf32>, vector<32x64xf32>, vector<2x64xf32> -> vector<2x64xf32>
    %c0_12 = arith.constant 0 : index
    %c0_13 = arith.constant 0 : index
    %44 = vector.load %arg5[%c0_12, %c0_13] : memref<1x64xf32, #tpu.memory_space<vmem>>, vector<1x64xf32>
    %45 = vector.broadcast %44 : vector<1x64xf32> to vector<2x64xf32>
    %46 = arith.addf %43, %45 : vector<2x64xf32>
    %cst_14 = arith.constant 0.000000e+00 : f32
    %47 = vector.broadcast %cst_14 : f32 to vector<2x64xf32>
    %48 = arith.maximumf %46, %47 : vector<2x64xf32>
    %c0_15 = arith.constant 0 : index
    %c0_16 = arith.constant 0 : index
    %49 = vector.load %arg6[%c0_15, %c0_16] : memref<64x128xf32, #tpu.memory_space<vmem>>, vector<64x128xf32>
    %cst_17 = arith.constant dense<0.000000e+00> : vector<2x128xf32>
    %50 = tpu.matmul %48, %49, %cst_17 {dimension_numbers = #tpu.dot_dimension_numbers<[1], [0], [0], [1], [0, 0, 1, 1], [], []>} : vector<2x64xf32>, vector<64x128xf32>, vector<2x128xf32> -> vector<2x128xf32>
    %c0_18 = arith.constant 0 : index
    %c0_19 = arith.constant 0 : index
    %51 = vector.load %arg7[%c0_18, %c0_19] : memref<1x128xf32, #tpu.memory_space<vmem>>, vector<1x128xf32>
    %52 = vector.broadcast %51 : vector<1x128xf32> to vector<2x128xf32>
    %53 = arith.addf %50, %52 : vector<2x128xf32>
    %c0_20 = arith.constant 0 : index
    %c0_21 = arith.constant 0 : index
    %54 = vector.load %arg8[%c0_20, %c0_21] : memref<2x128xf32, #tpu.memory_space<vmem>>, vector<2x128xf32>
    tpu.vector_store %arg8[%c0_20, %c0_21], %53 {strides = array<i32>} : memref<2x128xf32, #tpu.memory_space<vmem>>, vector<2x128xf32>,
    return
  }
  func.func @transform_0(%arg0: i32) -> (i32, i32, i32) {
    %c0_i32 = arith.constant 0 : i32
    %c0_i32_0 = arith.constant 0 : i32
    %c0_i32_1 = arith.constant 0 : i32
    return %arg0, %c0_i32, %c0_i32_0 : i32, i32, i32
  }
  func.func @transform_1(%arg0: i32) -> (i32, i32, i32) {
    %c0_i32 = arith.constant 0 : i32
    %c0_i32_0 = arith.constant 0 : i32
    %c0_i32_1 = arith.constant 0 : i32
    %c0_i32_2 = arith.constant 0 : i32
    return %c0_i32, %c0_i32_0, %c0_i32_1 : i32, i32, i32
  }
  func.func @transform_2(%arg0: i32) -> (i32, i32) {
    %c0_i32 = arith.constant 0 : i32
    %c0_i32_0 = arith.constant 0 : i32
    %c0_i32_1 = arith.constant 0 : i32
    return %c0_i32, %c0_i32_0 : i32, i32
  }
  func.func @transform_3(%arg0: i32) -> (i32, i32) {
    %c0_i32 = arith.constant 0 : i32
    %c0_i32_0 = arith.constant 0 : i32
    %c0_i32_1 = arith.constant 0 : i32
    return %c0_i32, %c0_i32_0 : i32, i32
  }
  func.func @transform_4(%arg0: i32) -> (i32, i32) {
    %c0_i32 = arith.constant 0 : i32
    %c0_i32_0 = arith.constant 0 : i32
    %c0_i32_1 = arith.constant 0 : i32
    return %c0_i32, %c0_i32_0 : i32, i32
  }
  func.func @transform_5(%arg0: i32) -> (i32, i32) {
    %c0_i32 = arith.constant 0 : i32
    %c0_i32_0 = arith.constant 0 : i32
    %c0_i32_1 = arith.constant 0 : i32
    return %c0_i32, %c0_i32_0 : i32, i32
  }
  func.func @transform_6(%arg0: i32) -> (i32, i32) {
    %c0_i32 = arith.constant 0 : i32
    %c0_i32_0 = arith.constant 0 : i32
    %c0_i32_1 = arith.constant 0 : i32
    return %c0_i32, %c0_i32_0 : i32, i32
  }
  func.func @transform_7(%arg0: i32) -> (i32, i32) {
    %c0_i32 = arith.constant 0 : i32
    %c0_i32_0 = arith.constant 0 : i32
    return %arg0, %c0_i32 : i32, i32
  }
}

</mosaic_0001>

<llo_original>
// kernel: tpu_custom_call.1
$region0: #{tpu_custom_call.1}
  #allocation0 [shape = 'u32[]', space=smem, size = 0x4, offset = 0x4, fixed_abs, tag = 'smem constant byte address 0x4 - core index']
  #allocation1 [shape = 'u32[144,128]{1,0:T(1,128)}', space=vmem, size = 0x12000, scoped, tag = 'internal scratch']
  %s0 = inlined_call_operand.vmem [shape: f32[2,4,256], index: 0, kind: input, shape index: {}]
  %s1 = inlined_call_operand.vmem [shape: f32[4,32,1], index: 1, kind: input, shape index: {}]
  %s2 = inlined_call_operand.vmem [shape: f32[32,1], index: 2, kind: input, shape index: {}]
  %s3 = inlined_call_operand.vmem [shape: f32[32,64], index: 3, kind: input, shape index: {}]
  %s4 = inlined_call_operand.vmem [shape: f32[1,64], index: 4, kind: input, shape index: {}]
  %s5 = inlined_call_operand.vmem [shape: f32[64,128], index: 5, kind: input, shape index: {}]
  %s6 = inlined_call_operand.vmem [shape: f32[1,128], index: 6, kind: input, shape index: {}]
  %s7 = inlined_call_operand.hbm [shape: f32[2,128], index: 7, kind: output, shape index: {}]
  %s8 = sld [smem:[#allocation0]]
  $region38: #{tpu_custom_call.1} parent=0
    _
  %s10 = ssub.s32 1, %s8
  %s11 = scalar_select 0, %s10, %s8
  $region1: #{tpu_custom_call.1} parent=0
    #allocation2 [shape = 'u8[1024]{0}', space=vmem, size = 0x400, scoped, tag = 'output window, operand 0, single buffered']
    #allocation3 [shape = 's32[1]{0}', space=sflag, size = 0x4, scoped, tag = 'scoped memory for tpu_custom_call.1']
    %12 = vsyncpa [#allocation3], 0
    // Predicated region
    $region2: #{tpu_custom_call.1} parent=1 // pred_check
      _
    $region3: #{tpu_custom_call.1} parent=1 // pred_check_branch
      %14 = sbr.rel (0) target = $region5
    $region4: #{tpu_custom_call.1} parent=1 // pred_region
      _
    $region5: #{tpu_custom_call.1} parent=1 // pred_fallthru
      _
    // Predicated region
    $region6: #{tpu_custom_call.1} parent=1 // pred_check
      _
    $region7: #{tpu_custom_call.1} parent=1 // pred_check_branch
      %16 = sbr.rel (0) target = $region9
    $region8: #{tpu_custom_call.1} parent=1 // pred_region
      _
    $region9: #{tpu_custom_call.1} parent=1 // pred_fallthru
      _
    // Predicated region
    $region10: #{tpu_custom_call.1} parent=1 // pred_check
      _
    $region11: #{tpu_custom_call.1} parent=1 // pred_check_branch
      %18 = sbr.rel (0) target = $region13
    $region12: #{tpu_custom_call.1} parent=1 // pred_region
      _
    $region13: #{tpu_custom_call.1} parent=1 // pred_fallthru
      _
    // Predicated region
    $region14: #{tpu_custom_call.1} parent=1 // pred_check
      _
    $region15: #{tpu_custom_call.1} parent=1 // pred_check_branch
      %20 = sbr.rel (0) target = $region17
    $region16: #{tpu_custom_call.1} parent=1 // pred_region
      _
    $region17: #{tpu_custom_call.1} parent=1 // pred_fallthru
      _
    // Predicated region
    $region18: #{tpu_custom_call.1} parent=1 // pred_check
      _
    $region19: #{tpu_custom_call.1} parent=1 // pred_check_branch
      %22 = sbr.rel (0) target = $region21
    $region20: #{tpu_custom_call.1} parent=1 // pred_region
      _
    $region21: #{tpu_custom_call.1} parent=1 // pred_fallthru
      _
    // Predicated region
    $region22: #{tpu_custom_call.1} parent=1 // pred_check
      _
    $region23: #{tpu_custom_call.1} parent=1 // pred_check_branch
      %24 = sbr.rel (0) target = $region25
    $region24: #{tpu_custom_call.1} parent=1 // pred_region
      _
    $region25: #{tpu_custom_call.1} parent=1 // pred_fallthru
      _
    // Predicated region
    $region26: #{tpu_custom_call.1} parent=1 // pred_check
      _
    $region27: #{tpu_custom_call.1} parent=1 // pred_check_branch
      %26 = sbr.rel (0) target = $region29
    $region28: #{tpu_custom_call.1} parent=1 // pred_region
      _
    $region29: #{tpu_custom_call.1} parent=1 // pred_fallthru
      _
    %v27 = vld [vmem:[%s0] sm:$0xff]
    %v28 = vld [vmem:[%s0 + $0x8] sm:$0xff]
    %v29 = vld [vmem:[%s1] sm:$0xff]
    %v30 = vld [vmem:[%s1 + $0x8] sm:$0xff]
    %v31 = vld [vmem:[%s1 + $0x10] sm:$0xff]
    %v32 = vld [vmem:[%s1 + $0x18] sm:$0xff]
    %v33 = vld [vmem:[%s1 + $0x20] sm:$0xff]
    %v34 = vld [vmem:[%s1 + $0x28] sm:$0xff]
    %v35 = vld [vmem:[%s1 + $0x30] sm:$0xff]
    %v36 = vld [vmem:[%s1 + $0x38] sm:$0xff]
    %v37 = vld [vmem:[%s1 + $0x40] sm:$0xff]
    %v38 = vld [vmem:[%s1 + $0x48] sm:$0xff]
    %v39 = vld [vmem:[%s1 + $0x50] sm:$0xff]
    %v40 = vld [vmem:[%s1 + $0x58] sm:$0xff]
    %v41 = vld [vmem:[%s1 + $0x60] sm:$0xff]
    %v42 = vld [vmem:[%s1 + $0x68] sm:$0xff]
    %v43 = vld [vmem:[%s1 + $0x70] sm:$0xff]
    %v44 = vld [vmem:[%s1 + $0x78] sm:$0xff]
    %v47 = vlaneseq
    %v48 = vshrl.u32 %v47, 7
    %v49 = vsub.s32 0, %v48
    %v50 = vrot.slane %v27, %v49
    %v51 = vlaneseq
    %v52 = vshrl.u32 %v51, 7
    %v53 = vsub.s32 4, %v52
    %v54 = vrot.slane %v27, %v53
    %v55 = vlaneseq
    %v56 = vshrl.u32 %v55, 7
    %v57 = vsub.s32 0, %v56
    %v58 = vrot.slane %v28, %v57
    %v59 = vlaneseq
    %v60 = vshrl.u32 %v59, 7
    %v61 = vsub.s32 4, %v60
    %v62 = vrot.slane %v28, %v61
    %v67 = vlaneseq
    %v68 = vshrl.u32 %v67, 7
    %v69 = vsub.s32 0, %v68
    %v70 = vrot.slane %v50, %v69
    %v71 = vlaneseq
    %v72 = vshrl.u32 %v71, 7
    %v73 = vsub.s32 0, %v72
    %v74 = vrot.slane %v54, %v73
    %v75 = vlaneseq
    %v76 = vshrl.u32 %v75, 7
    %v77 = vsub.s32 0, %v76
    %v78 = vrot.slane %v58, %v77
    %v79 = vlaneseq
    %v80 = vshrl.u32 %v79, 7
    %v81 = vsub.s32 0, %v80
    %v82 = vrot.slane %v62, %v81
    %84 = vset.pattern.permute.xlu0 0
    %85 = vperm.xlu0 %84, %v29
    %v86 = vpop.permute.xlu0 %85
    %89 = vset.pattern.permute.xlu0 0
    %90 = vperm.xlu0 %89, %v30
    %v91 = vpop.permute.xlu0 %90
    %94 = vset.pattern.permute.xlu0 0
    %95 = vperm.xlu0 %94, %v31
    %v96 = vpop.permute.xlu0 %95
    %99 = vset.pattern.permute.xlu0 0
    %100 = vperm.xlu0 %99, %v32
    %v101 = vpop.permute.xlu0 %100
    %v103 = vmul.f32 %v70, %v86
    %v104 = vmul.f32 %v74, %v86
    %v105 = vmul.f32 %v70, %v91
    %v106 = vmul.f32 %v74, %v91
    %v107 = vmul.f32 %v70, %v96
    %v108 = vmul.f32 %v74, %v96
    %v109 = vmul.f32 %v70, %v101
    %v110 = vmul.f32 %v74, %v101
    %v111 = vmul.f32 %v78, %v86
    %v112 = vmul.f32 %v82, %v86
    %v113 = vmul.f32 %v78, %v91
    %v114 = vmul.f32 %v82, %v91
    %v115 = vmul.f32 %v78, %v96
    %v116 = vmul.f32 %v82, %v96
    %v117 = vmul.f32 %v78, %v101
    %v118 = vmul.f32 %v82, %v101
    %v119 = vlaneseq
    %v120 = vshrl.u32 %v119, 7
    %v121 = vsub.s32 1, %v120
    %v122 = vrot.slane %v27, %v121
    %v123 = vlaneseq
    %v124 = vshrl.u32 %v123, 7
    %v125 = vsub.s32 5, %v124
    %v126 = vrot.slane %v27, %v125
    %v127 = vlaneseq
    %v128 = vshrl.u32 %v127, 7
    %v129 = vsub.s32 1, %v128
    %v130 = vrot.slane %v28, %v129
    %v131 = vlaneseq
    %v132 = vshrl.u32 %v131, 7
    %v133 = vsub.s32 5, %v132
    %v134 = vrot.slane %v28, %v133
    %v139 = vlaneseq
    %v140 = vshrl.u32 %v139, 7
    %v141 = vsub.s32 1, %v140
    %v142 = vrot.slane %v122, %v141
    %v143 = vlaneseq
    %v144 = vshrl.u32 %v143, 7
    %v145 = vsub.s32 1, %v144
    %v146 = vrot.slane %v126, %v145
    %v147 = vlaneseq
    %v148 = vshrl.u32 %v147, 7
    %v149 = vsub.s32 1, %v148
    %v150 = vrot.slane %v130, %v149
    %v151 = vlaneseq
    %v152 = vshrl.u32 %v151, 7
    %v153 = vsub.s32 1, %v152
    %v154 = vrot.slane %v134, %v153
    %156 = vset.pattern.permute.xlu0 0
    %157 = vperm.xlu0 %156, %v33
    %v158 = vpop.permute.xlu0 %157
    %161 = vset.pattern.permute.xlu0 0
    %162 = vperm.xlu0 %161, %v34
    %v163 = vpop.permute.xlu0 %162
    %166 = vset.pattern.permute.xlu0 0
    %167 = vperm.xlu0 %166, %v35
    %v168 = vpop.permute.xlu0 %167
    %171 = vset.pattern.permute.xlu0 0
    %172 = vperm.xlu0 %171, %v36
    %v173 = vpop.permute.xlu0 %172
    %v175 = vmul.f32 %v142, %v158
    %v176 = vmul.f32 %v146, %v158
    %v177 = vmul.f32 %v142, %v163
    %v178 = vmul.f32 %v146, %v163
    %v179 = vmul.f32 %v142, %v168
    %v180 = vmul.f32 %v146, %v168
    %v181 = vmul.f32 %v142, %v173
    %v182 = vmul.f32 %v146, %v173
    %v183 = vmul.f32 %v150, %v158
    %v184 = vmul.f32 %v154, %v158
    %v185 = vmul.f32 %v150, %v163
    %v186 = vmul.f32 %v154, %v163
    %v187 = vmul.f32 %v150, %v168
    %v188 = vmul.f32 %v154, %v168
    %v189 = vmul.f32 %v150, %v173
    %v190 = vmul.f32 %v154, %v173
    %v191 = vadd.f32 %v103, %v175
    %v192 = vadd.f32 %v104, %v176
    %v193 = vadd.f32 %v105, %v177
    %v194 = vadd.f32 %v106, %v178
    %v195 = vadd.f32 %v107, %v179
    %v196 = vadd.f32 %v108, %v180
    %v197 = vadd.f32 %v109, %v181
    %v198 = vadd.f32 %v110, %v182
    %v199 = vadd.f32 %v111, %v183
    %v200 = vadd.f32 %v112, %v184
    %v201 = vadd.f32 %v113, %v185
    %v202 = vadd.f32 %v114, %v186
    %v203 = vadd.f32 %v115, %v187
    %v204 = vadd.f32 %v116, %v188
    %v205 = vadd.f32 %v117, %v189
    %v206 = vadd.f32 %v118, %v190
    %v207 = vlaneseq
    %v208 = vshrl.u32 %v207, 7
    %v209 = vsub.s32 2, %v208
    %v210 = vrot.slane %v27, %v209
    %v211 = vlaneseq
    %v212 = vshrl.u32 %v211, 7
    %v213 = vsub.s32 6, %v212
    %v214 = vrot.slane %v27, %v213
    %v215 = vlaneseq
    %v216 = vshrl.u32 %v215, 7
    %v217 = vsub.s32 2, %v216
    %v218 = vrot.slane %v28, %v217
    %v219 = vlaneseq
    %v220 = vshrl.u32 %v219, 7
    %v221 = vsub.s32 6, %v220
    %v222 = vrot.slane %v28, %v221
    %v227 = vlaneseq
    %v228 = vshrl.u32 %v227, 7
    %v229 = vsub.s32 2, %v228
    %v230 = vrot.slane %v210, %v229
    %v231 = vlaneseq
    %v232 = vshrl.u32 %v231, 7
    %v233 = vsub.s32 2, %v232
    %v234 = vrot.slane %v214, %v233
    %v235 = vlaneseq
    %v236 = vshrl.u32 %v235, 7
    %v237 = vsub.s32 2, %v236
    %v238 = vrot.slane %v218, %v237
    %v239 = vlaneseq
    %v240 = vshrl.u32 %v239, 7
    %v241 = vsub.s32 2, %v240
    %v242 = vrot.slane %v222, %v241
    %244 = vset.pattern.permute.xlu0 0
    %245 = vperm.xlu0 %244, %v37
    %v246 = vpop.permute.xlu0 %245
    %249 = vset.pattern.permute.xlu0 0
    %250 = vperm.xlu0 %249, %v38
    %v251 = vpop.permute.xlu0 %250
    %254 = vset.pattern.permute.xlu0 0
    %255 = vperm.xlu0 %254, %v39
    %v256 = vpop.permute.xlu0 %255
    %259 = vset.pattern.permute.xlu0 0
    %260 = vperm.xlu0 %259, %v40
    %v261 = vpop.permute.xlu0 %260
    %v263 = vmul.f32 %v230, %v246
    %v264 = vmul.f32 %v234, %v246
    %v265 = vmul.f32 %v230, %v251
    %v266 = vmul.f32 %v234, %v251
    %v267 = vmul.f32 %v230, %v256
    %v268 = vmul.f32 %v234, %v256
    %v269 = vmul.f32 %v230, %v261
    %v270 = vmul.f32 %v234, %v261
    %v271 = vmul.f32 %v238, %v246
    %v272 = vmul.f32 %v242, %v246
    %v273 = vmul.f32 %v238, %v251
    %v274 = vmul.f32 %v242, %v251
    %v275 = vmul.f32 %v238, %v256
    %v276 = vmul.f32 %v242, %v256
    %v277 = vmul.f32 %v238, %v261
    %v278 = vmul.f32 %v242, %v261
    %v279 = vadd.f32 %v191, %v263
    %v280 = vadd.f32 %v192, %v264
    %v281 = vadd.f32 %v193, %v265
    %v282 = vadd.f32 %v194, %v266
    %v283 = vadd.f32 %v195, %v267
    %v284 = vadd.f32 %v196, %v268
    %v285 = vadd.f32 %v197, %v269
    %v286 = vadd.f32 %v198, %v270
    %v287 = vadd.f32 %v199, %v271
    %v288 = vadd.f32 %v200, %v272
    %v289 = vadd.f32 %v201, %v273
    %v290 = vadd.f32 %v202, %v274
    %v291 = vadd.f32 %v203, %v275
    %v292 = vadd.f32 %v204, %v276
    %v293 = vadd.f32 %v205, %v277
    %v294 = vadd.f32 %v206, %v278
    %v295 = vlaneseq
    %v296 = vshrl.u32 %v295, 7
    %v297 = vsub.s32 3, %v296
    %v298 = vrot.slane %v27, %v297
    %v299 = vlaneseq
    %v300 = vshrl.u32 %v299, 7
    %v301 = vsub.s32 7, %v300
    %v302 = vrot.slane %v27, %v301
    %v303 = vlaneseq
    %v304 = vshrl.u32 %v303, 7
    %v305 = vsub.s32 3, %v304
    %v306 = vrot.slane %v28, %v305
    %v307 = vlaneseq
    %v308 = vshrl.u32 %v307, 7
    %v309 = vsub.s32 7, %v308
    %v310 = vrot.slane %v28, %v309
    %v315 = vlaneseq
    %v316 = vshrl.u32 %v315, 7
    %v317 = vsub.s32 3, %v316
    %v318 = vrot.slane %v298, %v317
    %v319 = vlaneseq
    %v320 = vshrl.u32 %v319, 7
    %v321 = vsub.s32 3, %v320
    %v322 = vrot.slane %v302, %v321
    %v323 = vlaneseq
    %v324 = vshrl.u32 %v323, 7
    %v325 = vsub.s32 3, %v324
    %v326 = vrot.slane %v306, %v325
    %v327 = vlaneseq
    %v328 = vshrl.u32 %v327, 7
    %v329 = vsub.s32 3, %v328
    %v330 = vrot.slane %v310, %v329
    %332 = vset.pattern.permute.xlu0 0
    %333 = vperm.xlu0 %332, %v41
    %v334 = vpop.permute.xlu0 %333
    %337 = vset.pattern.permute.xlu0 0
    %338 = vperm.xlu0 %337, %v42
    %v339 = vpop.permute.xlu0 %338
    %342 = vset.pattern.permute.xlu0 0
    %343 = vperm.xlu0 %342, %v43
    %v344 = vpop.permute.xlu0 %343
    %347 = vset.pattern.permute.xlu0 0
    %348 = vperm.xlu0 %347, %v44
    %v349 = vpop.permute.xlu0 %348
    %v351 = vmul.f32 %v318, %v334
    %v352 = vmul.f32 %v322, %v334
    %v353 = vmul.f32 %v318, %v339
    %v354 = vmul.f32 %v322, %v339
    %v355 = vmul.f32 %v318, %v344
    %v356 = vmul.f32 %v322, %v344
    %v357 = vmul.f32 %v318, %v349
    %v358 = vmul.f32 %v322, %v349
    %v359 = vmul.f32 %v326, %v334
    %v360 = vmul.f32 %v330, %v334
    %v361 = vmul.f32 %v326, %v339
    %v362 = vmul.f32 %v330, %v339
    %v363 = vmul.f32 %v326, %v344
    %v364 = vmul.f32 %v330, %v344
    %v365 = vmul.f32 %v326, %v349
    %v366 = vmul.f32 %v330, %v349
    %v367 = vadd.f32 %v279, %v351
    %v368 = vadd.f32 %v280, %v352
    %v369 = vadd.f32 %v281, %v353
    %v370 = vadd.f32 %v282, %v354
    %v371 = vadd.f32 %v283, %v355
    %v372 = vadd.f32 %v284, %v356
    %v373 = vadd.f32 %v285, %v357
    %v374 = vadd.f32 %v286, %v358
    %v375 = vadd.f32 %v287, %v359
    %v376 = vadd.f32 %v288, %v360
    %v377 = vadd.f32 %v289, %v361
    %v378 = vadd.f32 %v290, %v362
    %v379 = vadd.f32 %v291, %v363
    %v380 = vadd.f32 %v292, %v364
    %v381 = vadd.f32 %v293, %v365
    %v382 = vadd.f32 %v294, %v366
    %v383 = vld [vmem:[%s2] sm:$0xff]
    %v384 = vld [vmem:[%s2 + $0x8] sm:$0xff]
    %v385 = vld [vmem:[%s2 + $0x10] sm:$0xff]
    %v386 = vld [vmem:[%s2 + $0x18] sm:$0xff]
    %388 = vset.pattern.permute.xlu0 0
    %389 = vperm.xlu0 %388, %v383
    %v390 = vpop.permute.xlu0 %389
    %393 = vset.pattern.permute.xlu0 0
    %394 = vperm.xlu0 %393, %v384
    %v395 = vpop.permute.xlu0 %394
    %398 = vset.pattern.permute.xlu0 0
    %399 = vperm.xlu0 %398, %v385
    %v400 = vpop.permute.xlu0 %399
    %403 = vset.pattern.permute.xlu0 0
    %404 = vperm.xlu0 %403, %v386
    %v405 = vpop.permute.xlu0 %404
    %v407 = vadd.f32 %v367, %v390
    %v408 = vadd.f32 %v368, %v390
    %v409 = vadd.f32 %v369, %v395
    %v410 = vadd.f32 %v370, %v395
    %v411 = vadd.f32 %v371, %v400
    %v412 = vadd.f32 %v372, %v400
    %v413 = vadd.f32 %v373, %v405
    %v414 = vadd.f32 %v374, %v405
    %v415 = vadd.f32 %v375, %v390
    %v416 = vadd.f32 %v376, %v390
    %v417 = vadd.f32 %v377, %v395
    %v418 = vadd.f32 %v378, %v395
    %v419 = vadd.f32 %v379, %v400
    %v420 = vadd.f32 %v380, %v400
    %v421 = vadd.f32 %v381, %v405
    %v422 = vadd.f32 %v382, %v405
    %v423 = vmax.f32 %v407, 0.0
    %v424 = vmax.f32 %v408, 0.0
    %v425 = vmax.f32 %v409, 0.0
    %v426 = vmax.f32 %v410, 0.0
    %v427 = vmax.f32 %v411, 0.0
    %v428 = vmax.f32 %v412, 0.0
    %v429 = vmax.f32 %v413, 0.0
    %v430 = vmax.f32 %v414, 0.0
    %v431 = vmax.f32 %v415, 0.0
    %v432 = vmax.f32 %v416, 0.0
    %v433 = vmax.f32 %v417, 0.0
    %v434 = vmax.f32 %v418, 0.0
    %v435 = vmax.f32 %v419, 0.0
    %v436 = vmax.f32 %v420, 0.0
    %v437 = vmax.f32 %v421, 0.0
    %v438 = vmax.f32 %v422, 0.0
    %v439 = vadd.f32 %v423, %v424
    %440 = vadd.xlane.f32.xlu0 %v439
    %v441 = vpop.xlane.xlu0 %440
    %v442 = vadd.f32 %v425, %v426
    %443 = vadd.xlane.f32.xlu0 %v442
    %v444 = vpop.xlane.xlu0 %443
    %v445 = vadd.f32 %v427, %v428
    %446 = vadd.xlane.f32.xlu0 %v445
    %v447 = vpop.xlane.xlu0 %446
    %v448 = vadd.f32 %v429, %v430
    %449 = vadd.xlane.f32.xlu0 %v448
    %v450 = vpop.xlane.xlu0 %449
    %v451 = vadd.f32 %v431, %v432
    %452 = vadd.xlane.f32.xlu0 %v451
    %v453 = vpop.xlane.xlu0 %452
    %v454 = vadd.f32 %v433, %v434
    %455 = vadd.xlane.f32.xlu0 %v454
    %v456 = vpop.xlane.xlu0 %455
    %v457 = vadd.f32 %v435, %v436
    %458 = vadd.xlane.f32.xlu0 %v457
    %v459 = vpop.xlane.xlu0 %458
    %v460 = vadd.f32 %v437, %v438
    %461 = vadd.xlane.f32.xlu0 %v460
    %v462 = vpop.xlane.xlu0 %461
    %v463 = vmul.f32 %v441, 0.00390625
    %v464 = vmul.f32 %v444, 0.00390625
    %v465 = vmul.f32 %v447, 0.00390625
    %v466 = vmul.f32 %v450, 0.00390625
    %v467 = vmul.f32 %v453, 0.00390625
    %v468 = vmul.f32 %v456, 0.00390625
    %v469 = vmul.f32 %v459, 0.00390625
    %v470 = vmul.f32 %v462, 0.00390625
    %v471 = vld [vmem:[%s3] sm:$0xff]
    %v472 = vld [vmem:[%s3 + $0x8] sm:$0xff]
    %v473 = vld [vmem:[%s3 + $0x10] sm:$0xff]
    %v474 = vld [vmem:[%s3 + $0x18] sm:$0xff]
    %v475 = vld [vmem:[%s4] sm:$0x1]
    %v477 = vlaneseq
    %v478 = vshrl.u32 %v477, 7
    %v479 = vsub.s32 0, %v478
    %v480 = vrot.slane %v475, %v479
    %v490 = vlaneseq
    %v491 = vand.u32 %v490, 127
    %v492 = vlaneseq
    %v493 = vshrl.u32 %v492, 7
    %v494 = vsub.s32 %v491, %v493
    %v495 = vrot.slane %v463, %v494
    %v496 = vadd.s32 %v491, 4294967288
    %v497 = vlaneseq
    %v498 = vshrl.u32 %v497, 7
    %v499 = vsub.s32 %v496, %v498
    %v500 = vrot.slane %v464, %v499
    %vm501 = vcmask 130112
    %v502 = vsel %vm501, %v500, %v495
    %v503 = vadd.s32 %v491, 4294967280
    %v504 = vlaneseq
    %v505 = vshrl.u32 %v504, 7
    %v506 = vsub.s32 %v503, %v505
    %v507 = vrot.slane %v465, %v506
    %vm508 = vcmask 195712
    %v509 = vsel %vm508, %v507, %v502
    %v510 = vadd.s32 %v491, 4294967272
    %v511 = vlaneseq
    %v512 = vshrl.u32 %v511, 7
    %v513 = vsub.s32 %v510, %v512
    %v514 = vrot.slane %v466, %v513
    %vm515 = vcmask 261312
    %v516 = vsel %vm515, %v514, %v509
    %v517 = vlaneseq
    %v518 = vshrl.u32 %v517, 7
    %v519 = vsub.s32 %v491, %v518
    %v520 = vrot.slane %v467, %v519
    %v521 = vlaneseq
    %v522 = vshrl.u32 %v521, 7
    %v523 = vsub.s32 %v496, %v522
    %v524 = vrot.slane %v468, %v523
    %v525 = vsel %vm501, %v524, %v520
    %v526 = vlaneseq
    %v527 = vshrl.u32 %v526, 7
    %v528 = vsub.s32 %v503, %v527
    %v529 = vrot.slane %v469, %v528
    %v530 = vsel %vm508, %v529, %v525
    %v531 = vlaneseq
    %v532 = vshrl.u32 %v531, 7
    %v533 = vsub.s32 %v510, %v532
    %v534 = vrot.slane %v470, %v533
    %v535 = vsel %vm515, %v534, %v530
    %vm536 = vcmask 1041409
    %v537 = vsel %vm536, %v535, %v516
    %vm538 = vcmask 261120
    %v539 = vsel %vm538, %v537, 0
    %541 = vmatprep.subr.mxu0 0.0
    %542 = vmatpush1.msra.mxu0 %v471
    %543 = vmatprep.subr.mxu0 0.0
    %544 = vmatpush1.msra.mxu0 %v472
    %545 = vmatprep.subr.mxu0 0.0
    %546 = vmatpush1.msra.mxu0 %v473
    %547 = vmatprep.subr.mxu0 0.0
    %548 = vmatpush1.msra.mxu0 %v474
    %549 = vmatprep.subr.mxu0 0.0
    %550 = vmatpush1.msra.mxu0 0.0
    %551 = vmatprep.subr.mxu0 0.0
    %552 = vmatpush1.msra.mxu0 0.0
    %553 = vmatprep.subr.mxu0 0.0
    %554 = vmatpush1.msra.mxu0 0.0
    %555 = vmatprep.subr.mxu0 0.0
    %556 = vmatpush1.msra.mxu0 0.0
    %557 = vmatprep.subr.mxu0 0.0
    %558 = vmatpush1.msra.mxu0 0.0
    %559 = vmatprep.subr.mxu0 0.0
    %560 = vmatpush1.msra.mxu0 0.0
    %561 = vmatprep.subr.mxu0 0.0
    %562 = vmatpush1.msra.mxu0 0.0
    %563 = vmatprep.subr.mxu0 0.0
    %564 = vmatpush1.msra.mxu0 0.0
    %565 = vmatprep.subr.mxu0 0.0
    %566 = vmatpush1.msra.mxu0 0.0
    %567 = vmatprep.subr.mxu0 0.0
    %568 = vmatpush1.msra.mxu0 0.0
    %569 = vmatprep.subr.mxu0 0.0
    %570 = vmatpush1.msra.mxu0 0.0
    %571 = vmatprep.subr.mxu0 0.0
    %572 = vmatpush1.msra.mxu0 0.0
    %573 = vmatprep.subr.mxu0 0.0
    %574 = vmatpush1.msra.mxu0 0.0
    %575 = vmatprep.subr.mxu0 0.0
    %576 = vmatpush1.msra.mxu0 0.0
    %577 = vmatprep.subr.mxu0 0.0
    %578 = vmatpush1.msra.mxu0 0.0
    %579 = vmatprep.subr.mxu0 0.0
    %580 = vmatpush1.msra.mxu0 0.0
    %581 = vmatprep.subr.mxu0 0.0
    %582 = vmatpush1.msra.mxu0 0.0
    %583 = vmatprep.subr.mxu0 0.0
    %584 = vmatpush1.msra.mxu0 0.0
    %585 = vmatprep.subr.mxu0 0.0
    %586 = vmatpush1.msra.mxu0 0.0
    %587 = vmatprep.subr.mxu0 0.0
    %588 = vmatpush1.msra.mxu0 0.0
    %589 = vmatprep.subr.mxu0 0.0
    %590 = vmatpush1.msra.mxu0 0.0
    %591 = vmatprep.subr.mxu0 0.0
    %592 = vmatpush1.msra.mxu0 0.0
    %593 = vmatprep.subr.mxu0 0.0
    %594 = vmatpush1.msra.mxu0 0.0
    %595 = vmatprep.subr.mxu0 0.0
    %596 = vmatpush1.msra.mxu0 0.0
    %597 = vmatprep.subr.mxu0 0.0
    %598 = vmatpush1.msra.mxu0 0.0
    %599 = vmatprep.subr.mxu0 0.0
    %600 = vmatpush1.msra.mxu0 0.0
    %601 = vmatprep.subr.mxu0 0.0
    %602 = vmatpush1.msra.mxu0 0.0
    %603 = vmatprep.subr.mxu0 0.0
    %604 = vmatpush1.msra.mxu0 0.0
    %605 = vmatprep.mubr.f32.mxu0 0.0
    %606 = vmatmul.mubr.f32.gmra.mrb[0].mxu0 %v539
    %v607 = vpop.f32.mrb[0].mxu0
    %v608 = vadd.f32 %v480, %v607
    %v609 = vpop.f32.mrb[0].mxu0
    %610 = vdwg.mxu0
    %v611 = vmax.f32 %v608, 0.0
    %v612 = vld [vmem:[%s5] sm:$0xff]
    %v613 = vld [vmem:[%s5 + $0x8] sm:$0xff]
    %v614 = vld [vmem:[%s5 + $0x10] sm:$0xff]
    %v615 = vld [vmem:[%s5 + $0x18] sm:$0xff]
    %v616 = vld [vmem:[%s5 + $0x20] sm:$0xff]
    %v617 = vld [vmem:[%s5 + $0x28] sm:$0xff]
    %v618 = vld [vmem:[%s5 + $0x30] sm:$0xff]
    %v619 = vld [vmem:[%s5 + $0x38] sm:$0xff]
    %v620 = vld [vmem:[%s6] sm:$0x1]
    %v622 = vlaneseq
    %v623 = vshrl.u32 %v622, 7
    %v624 = vsub.s32 0, %v623
    %v625 = vrot.slane %v620, %v624
    %vm627 = vcmask 523264
    %v629 = vsel %vm627, %v611, 0
    %631 = vmatprep.subr.mxu0 0.0
    %632 = vmatpush1.msra.mxu0 %v612
    %633 = vmatprep.subr.mxu0 0.0
    %634 = vmatpush1.msra.mxu0 %v613
    %635 = vmatprep.subr.mxu0 0.0
    %636 = vmatpush1.msra.mxu0 %v614
    %637 = vmatprep.subr.mxu0 0.0
    %638 = vmatpush1.msra.mxu0 %v615
    %639 = vmatprep.subr.mxu0 0.0
    %640 = vmatpush1.msra.mxu0 %v616
    %641 = vmatprep.subr.mxu0 0.0
    %642 = vmatpush1.msra.mxu0 %v617
    %643 = vmatprep.subr.mxu0 0.0
    %644 = vmatpush1.msra.mxu0 %v618
    %645 = vmatprep.subr.mxu0 0.0
    %646 = vmatpush1.msra.mxu0 %v619
    %647 = vmatprep.subr.mxu0 0.0
    %648 = vmatpush1.msra.mxu0 0.0
    %649 = vmatprep.subr.mxu0 0.0
    %650 = vmatpush1.msra.mxu0 0.0
    %651 = vmatprep.subr.mxu0 0.0
    %652 = vmatpush1.msra.mxu0 0.0
    %653 = vmatprep.subr.mxu0 0.0
    %654 = vmatpush1.msra.mxu0 0.0
    %655 = vmatprep.subr.mxu0 0.0
    %656 = vmatpush1.msra.mxu0 0.0
    %657 = vmatprep.subr.mxu0 0.0
    %658 = vmatpush1.msra.mxu0 0.0
    %659 = vmatprep.subr.mxu0 0.0
    %660 = vmatpush1.msra.mxu0 0.0
    %661 = vmatprep.subr.mxu0 0.0
    %662 = vmatpush1.msra.mxu0 0.0
    %663 = vmatprep.subr.mxu0 0.0
    %664 = vmatpush1.msra.mxu0 0.0
    %665 = vmatprep.subr.mxu0 0.0
    %666 = vmatpush1.msra.mxu0 0.0
    %667 = vmatprep.subr.mxu0 0.0
    %668 = vmatpush1.msra.mxu0 0.0
    %669 = vmatprep.subr.mxu0 0.0
    %670 = vmatpush1.msra.mxu0 0.0
    %671 = vmatprep.subr.mxu0 0.0
    %672 = vmatpush1.msra.mxu0 0.0
    %673 = vmatprep.subr.mxu0 0.0
    %674 = vmatpush1.msra.mxu0 0.0
    %675 = vmatprep.subr.mxu0 0.0
    %676 = vmatpush1.msra.mxu0 0.0
    %677 = vmatprep.subr.mxu0 0.0
    %678 = vmatpush1.msra.mxu0 0.0
    %679 = vmatprep.subr.mxu0 0.0
    %680 = vmatpush1.msra.mxu0 0.0
    %681 = vmatprep.subr.mxu0 0.0
    %682 = vmatpush1.msra.mxu0 0.0
    %683 = vmatprep.subr.mxu0 0.0
    %684 = vmatpush1.msra.mxu0 0.0
    %685 = vmatprep.subr.mxu0 0.0
    %686 = vmatpush1.msra.mxu0 0.0
    %687 = vmatprep.subr.mxu0 0.0
    %688 = vmatpush1.msra.mxu0 0.0
    %689 = vmatprep.subr.mxu0 0.0
    %690 = vmatpush1.msra.mxu0 0.0
    %691 = vmatprep.subr.mxu0 0.0
    %692 = vmatpush1.msra.mxu0 0.0
    %693 = vmatprep.subr.mxu0 0.0
    %694 = vmatpush1.msra.mxu0 0.0
    %695 = vmatprep.mubr.f32.mxu0 0.0
    %696 = vmatmul.mubr.f32.gmra.mrb[0].mxu0 %v629
    %v697 = vpop.f32.mrb[0].mxu0
    %v698 = vadd.f32 %v625, %v697
    %v699 = vpop.f32.mrb[0].mxu0
    %700 = vdwg.mxu0
    %701 = vst [vmem:[#allocation2] sm:$0x3] %v698
    // Predicated region
    $region30: #{tpu_custom_call.1} parent=1 // pred_check
      _
    $region31: #{tpu_custom_call.1} parent=1 // pred_check_branch
      %703 = sbr.rel (0) target = $region33
    $region32: #{tpu_custom_call.1} parent=1 // pred_region
      %s705 = ssub.s32 32, 32
      %706 = vsyncadd [#allocation3], %s705
      %s708 = sshll.u32 [#allocation2], 4
      %s709 = int_to_ptr.vmem [resolvable:$true] %s708
      %711 = dma.vmem_to_hbm [thread:$0]  %s709, 32, %s7, [#allocation3]
    $region33: #{tpu_custom_call.1} parent=1 // pred_fallthru
      _
    // Predicated region
    $region34: #{tpu_custom_call.1} parent=1 // pred_check
      _
    $region35: #{tpu_custom_call.1} parent=1 // pred_check_branch
      %713 = sbr.rel (0) target = $region37
    $region36: #{tpu_custom_call.1} parent=1 // pred_region
      %714 = dma.done [#allocation3], 32
    $region37: #{tpu_custom_call.1} parent=1 // pred_fallthru
      _
    %715 = vsyncpa [#allocation3], 1

</llo_original>
